<compile_context>
chip_gen: v6e
topology: v6e:2x2x1
jax: 0.10.0
libtpu: 0.0.40
codegen_flags: <defaults>
</compile_context>

<pallas_src>
import functools

import jax
import jax.numpy as jnp
from jax.experimental import pallas as pl
from jax.experimental.pallas import tpu as pltpu

# ----------------------- small demo config -----------------------
BATCH = 2
SEQ = 64
HIDDEN = 128          # config.hidden_size      (multiple of 128)
INTERMEDIATE = 512    # config.intermediate_size (multiple of 128)


def ast_output_kernel(h_ref, w_ref, b_ref, res_ref, o_ref, *, matmul_dtype):
    """One (tm, H) output row-tile: y = h @ W + b + residual (single K step)."""
    h = h_ref[...]
    w = w_ref[...]
    if matmul_dtype is not None:
        # bf16 operands, f32 accumulation on the MXU.
        h = h.astype(matmul_dtype)
        w = w.astype(matmul_dtype)
    acc = jnp.dot(h, w, preferred_element_type=jnp.float32)
    # Bias + residual fused into the lane-dense output store (dropout = identity
    # in eval mode). Epilogue kept in f32 (v5e VPU has no bf16 path).
    o_ref[...] = (acc + b_ref[...] + res_ref[...].astype(jnp.float32)).astype(
        o_ref.dtype)


def _round_up(x, m):
    return (x + m - 1) // m * m


def ast_output(hidden_states, input_tensor, weight, bias,
               *, tm=512, matmul_dtype=None):
    """Pallas implementation of ASTOutput.forward (eval mode).

    hidden_states: (B, S, I)  -- output of the intermediate (GELU) layer
    input_tensor:  (B, S, H)  -- residual stream
    weight:        (I, H)     -- dense weight, stored (in, out) so y = x @ W + b
    bias:          (H,)
    matmul_dtype:  None (exact f32) or jnp.bfloat16 (native-rate MXU, f32 acc)
    returns:       (B, S, H)
    """
    B, S, I = hidden_states.shape
    H = weight.shape[1]
    assert weight.shape == (I, H)
    assert input_tensor.shape == (B, S, H)
    assert bias.shape == (H,)

    M = B * S
    # Flatten (B, S) -> M so matmul operands are lane/sublane dense.
    h2d = hidden_states.reshape(M, I)
    r2d = input_tensor.reshape(M, H)
    b2d = bias.reshape(1, H)

    # K and N stay whole (weight is VMEM-resident); pad them only if the config
    # is not 128-aligned (never for real AST configs or this demo).
    Kp = _round_up(I, 128)
    Np = _round_up(H, 128)
    # TODO(synk): pre-pad / pre-cast the weight once at parameter-init time in a
    # real model instead of per forward call (no-op here since dims are aligned).
    w = weight
    if (Kp, Np) != (I, H):
        w = jnp.pad(w, ((0, Kp - I), (0, Np - H)))
    if Np != H:
        b2d = jnp.pad(b2d, ((0, 0), (0, Np - H)))
    if Kp != I:
        h2d = jnp.pad(h2d, ((0, 0), (0, Kp - I)))
    if Np != H:
        r2d = jnp.pad(r2d, ((0, 0), (0, Np - H)))

    if matmul_dtype is not None:
        # Cast the (parameter) weight once in the wrapper: halves weight DMA
        # bytes. Activations are cast in-kernel to avoid an extra HBM pass.
        w = w.astype(matmul_dtype)

    # Row tiling: sublane-aligned, never larger than the (padded) problem.
    tm = min(tm, _round_up(M, 8))
    Mp = _round_up(M, tm)
    if Mp != M:
        h2d = jnp.pad(h2d, ((0, Mp - M), (0, 0)))
        r2d = jnp.pad(r2d, ((0, Mp - M), (0, 0)))

    grid = (Mp // tm,)

    # Explicit VMEM budget: double-buffered h / residual / out tiles plus the
    # resident weight + bias (keep headroom; avoids silent shrink on the
    # 16/32 MiB scoped defaults, and stays within v7x's 64 MiB physical VMEM).
    esz = jnp.dtype(hidden_states.dtype).itemsize
    wsz = jnp.dtype(w.dtype).itemsize
    osz = jnp.dtype(hidden_states.dtype).itemsize
    vmem_est = (2 * tm * Kp * esz          # hidden tiles (double-buffered)
                + 2 * Kp * Np * wsz        # resident weight (conservative 2x)
                + 2 * tm * Np * esz        # residual tiles
                + 2 * tm * Np * osz        # output tiles
                + 2 * Np * 4)              # bias
    vmem_limit = int(min(max(2 * vmem_est, 32 << 20), 64 << 20))

    kernel = functools.partial(ast_output_kernel, matmul_dtype=matmul_dtype)

    out_padded = pl.pallas_call(
        kernel,
        out_shape=jax.ShapeDtypeStruct((Mp, Np), hidden_states.dtype),
        grid_spec=pltpu.PrefetchScalarGridSpec(
            num_scalar_prefetch=0,
            grid=grid,
            in_specs=[
                pl.BlockSpec((tm, Kp), lambda i: (i, 0)),   # hidden rows
                pl.BlockSpec((Kp, Np), lambda i: (0, 0)),   # weight (resident)
                pl.BlockSpec((1, Np), lambda i: (0, 0)),    # bias   (resident)
                pl.BlockSpec((tm, Np), lambda i: (i, 0)),   # residual rows
            ],
            out_specs=pl.BlockSpec((tm, Np), lambda i: (i, 0)),
        ),
        compiler_params=pltpu.CompilerParams(
            dimension_semantics=("parallel",),
            vmem_limit_bytes=vmem_limit,
        ),
    )(h2d, w, b2d, r2d)

    if (Mp, Np) != (M, H):
        out_padded = out_padded[:M, :H]
    return out_padded.reshape(B, S, H)


if __name__ == "__main__":
    key = jax.random.PRNGKey(0)
    k_h, k_r, k_w, k_b = jax.random.split(key, 4)

    hidden_states = jax.random.normal(
        k_h, (BATCH, SEQ, INTERMEDIATE), jnp.float32)
    input_tensor = jax.random.normal(
        k_r, (BATCH, SEQ, HIDDEN), jnp.float32)
    weight = 0.02 * jax.random.normal(
        k_w, (INTERMEDIATE, HIDDEN), jnp.float32)
    bias = 0.02 * jax.random.normal(k_b, (HIDDEN,), jnp.float32)

    # Pure-JAX reference (same semantics as the PyTorch module in eval mode).
    ref = jnp.einsum("bsi,ih->bsh", hidden_states, weight) + bias + input_tensor

    # Exact-f32 path (matches PyTorch numerics).
    out = ast_output(hidden_states, input_tensor, weight, bias)
    out = jax.block_until_ready(out)
    assert out.shape == (BATCH, SEQ, HIDDEN)
    assert jnp.isfinite(out).all()
    assert jnp.allclose(out, ref, atol=1e-4, rtol=1e-4), float(
        jnp.max(jnp.abs(out - ref)))

    # bf16-operand fast path (f32 accumulation + f32 epilogue); looser tolerance.
    out_bf16 = ast_output(hidden_states, input_tensor, weight, bias,
                          matmul_dtype=jnp.bfloat16)
    out_bf16 = jax.block_until_ready(out_bf16)
    assert jnp.isfinite(out_bf16).all()
    assert jnp.allclose(out_bf16, ref, atol=5e-2, rtol=5e-2), float(
        jnp.max(jnp.abs(out_bf16 - ref)))

    print("KERNEL_OK")
</pallas_src>

<mosaic_0001>
module attributes {stable_mosaic.version = 11 : i64} {
  func.func @ast_output_kernel(%arg0: i32, %arg1: memref<128x512xf32, #tpu.memory_space<vmem>>, %arg2: memref<512x128xf32, #tpu.memory_space<vmem>>, %arg3: memref<1x128xf32, #tpu.memory_space<vmem>>, %arg4: memref<128x128xf32, #tpu.memory_space<vmem>>, %arg5: memref<128x128xf32, #tpu.memory_space<vmem>>) attributes {dimension_semantics = [#tpu.dimension_semantics<parallel>], iteration_bounds = array<i64: 1>, scalar_prefetch = 0 : i64, scratch_operands = 0 : i64, tpu.core_type = #tpu.core_type<tc>, window_params = [{transform_indices = @transform_0, window_bounds = array<i64: 128, 512>}, {pipeline_mode = #tpu.pipeline_mode<synchronous>, transform_indices = @transform_1, window_bounds = array<i64: 512, 128>}, {pipeline_mode = #tpu.pipeline_mode<synchronous>, transform_indices = @transform_2, window_bounds = array<i64: 1, 128>}, {transform_indices = @transform_3, window_bounds = array<i64: 128, 128>}, {transform_indices = @transform_4, window_bounds = array<i64: 128, 128>}]} {
    %c0 = arith.constant 0 : index
    %c0_0 = arith.constant 0 : index
    %0 = vector.load %arg1[%c0, %c0_0] : memref<128x512xf32, #tpu.memory_space<vmem>>, vector<128x512xf32>
    %c0_1 = arith.constant 0 : index
    %c0_2 = arith.constant 0 : index
    %1 = vector.load %arg2[%c0_1, %c0_2] : memref<512x128xf32, #tpu.memory_space<vmem>>, vector<512x128xf32>
    %cst = arith.constant dense<0.000000e+00> : vector<128x128xf32>
    %2 = tpu.matmul %0, %1, %cst {dimension_numbers = #tpu.dot_dimension_numbers<[1], [0], [0], [1], [0, 0, 1, 1], [], []>} : vector<128x512xf32>, vector<512x128xf32>, vector<128x128xf32> -> vector<128x128xf32>
    %c0_3 = arith.constant 0 : index
    %c0_4 = arith.constant 0 : index
    %3 = vector.load %arg3[%c0_3, %c0_4] : memref<1x128xf32, #tpu.memory_space<vmem>>, vector<1x128xf32>
    %4 = vector.broadcast %3 : vector<1x128xf32> to vector<128x128xf32>
    %5 = arith.addf %2, %4 : vector<128x128xf32>
    %c0_5 = arith.constant 0 : index
    %c0_6 = arith.constant 0 : index
    %6 = vector.load %arg4[%c0_5, %c0_6] : memref<128x128xf32, #tpu.memory_space<vmem>>, vector<128x128xf32>
    %7 = arith.addf %5, %6 : vector<128x128xf32>
    %c0_7 = arith.constant 0 : index
    %c0_8 = arith.constant 0 : index
    %8 = vector.load %arg5[%c0_7, %c0_8] : memref<128x128xf32, #tpu.memory_space<vmem>>, vector<128x128xf32>
    tpu.vector_store %arg5[%c0_7, %c0_8], %7 {strides = array<i32>} : memref<128x128xf32, #tpu.memory_space<vmem>>, vector<128x128xf32>,
    return
  }
  func.func @transform_0(%arg0: i32) -> (i32, i32) {
    %c0_i32 = arith.constant 0 : i32
    %c0_i32_0 = arith.constant 0 : i32
    return %arg0, %c0_i32 : i32, i32
  }
  func.func @transform_1(%arg0: i32) -> (i32, i32) {
    %c0_i32 = arith.constant 0 : i32
    %c0_i32_0 = arith.constant 0 : i32
    %c0_i32_1 = arith.constant 0 : i32
    return %c0_i32, %c0_i32_0 : i32, i32
  }
  func.func @transform_2(%arg0: i32) -> (i32, i32) {
    %c0_i32 = arith.constant 0 : i32
    %c0_i32_0 = arith.constant 0 : i32
    %c0_i32_1 = arith.constant 0 : i32
    return %c0_i32, %c0_i32_0 : i32, i32
  }
  func.func @transform_3(%arg0: i32) -> (i32, i32) {
    %c0_i32 = arith.constant 0 : i32
    %c0_i32_0 = arith.constant 0 : i32
    return %arg0, %c0_i32 : i32, i32
  }
  func.func @transform_4(%arg0: i32) -> (i32, i32) {
    %c0_i32 = arith.constant 0 : i32
    %c0_i32_0 = arith.constant 0 : i32
    return %arg0, %c0_i32 : i32, i32
  }
}

</mosaic_0001>

<llo_original>
// kernel: tpu_custom_call.1
$region0: #{tpu_custom_call.1}
  #allocation0 [shape = 'u32[]', space=smem, size = 0x4, offset = 0x4, fixed_abs, tag = 'smem constant byte address 0x4 - core index']
  #allocation1 [shape = 'u32[144,128]{1,0:T(1,128)}', space=vmem, size = 0x12000, scoped, tag = 'internal scratch']
  %s0 = inlined_call_operand.hbm [shape: f32[128,512], index: 0, kind: input, shape index: {}]
  %s1 = inlined_call_operand.hbm [shape: f32[512,128], index: 1, kind: input, shape index: {}]
  %s2 = inlined_call_operand.vmem [shape: f32[1,128], index: 2, kind: input, shape index: {}]
  %s3 = inlined_call_operand.hbm [shape: f32[128,128], index: 3, kind: input, shape index: {}]
  %s4 = inlined_call_operand.hbm [shape: f32[128,128], index: 4, kind: output, shape index: {}]
  %s5 = sld [smem:[#allocation0]]
  $region38: #{tpu_custom_call.1} parent=0
    _
  %s7 = ssub.s32 1, %s5
  %s8 = scalar_select 0, %s7, %s5
  $region1: #{tpu_custom_call.1} parent=0
    #allocation2 [shape = 'u8[262144]{0}', space=vmem, size = 0x40000, scoped, tag = 'input window, operand 0, single buffered']
    #allocation3 [shape = 's32[1]{0}', space=sflag, size = 0x4, scoped, tag = 'scoped memory for tpu_custom_call.1']
    #allocation4 [shape = 's32[1]{0}', space=sflag, size = 0x4, scoped, tag = 'scoped memory for tpu_custom_call.1']
    #allocation5 [shape = 'u8[262144]{0}', space=vmem, size = 0x40000, scoped, tag = 'input window, operand 1, single buffered']
    #allocation6 [shape = 's32[1]{0}', space=sflag, size = 0x4, scoped, tag = 'scoped memory for tpu_custom_call.1']
    #allocation7 [shape = 'u8[65536]{0}', space=vmem, size = 0x10000, scoped, tag = 'input window, operand 3, single buffered']
    #allocation8 [shape = 'u8[65536]{0}', space=vmem, size = 0x10000, scoped, tag = 'output window, operand 0, single buffered']
    %9 = vsyncpa [#allocation3], 0
    %10 = vsyncpa [#allocation6], 0
    %11 = vsyncpa [#allocation4], 0
    // Predicated region
    $region2: #{tpu_custom_call.1} parent=1 // pred_check
      _
    $region3: #{tpu_custom_call.1} parent=1 // pred_check_branch
      %13 = sbr.rel (0) target = $region5
    $region4: #{tpu_custom_call.1} parent=1 // pred_region
      %s15 = ssub.s32 8192, 8192
      %16 = vsyncadd [#allocation3], %s15
      %s17 = sshll.u32 [#allocation2], 4
      %s18 = int_to_ptr.vmem [resolvable:$true] %s17
      %23 = dma.hbm_to_vmem [thread:$0]  %s0, 8192, %s18, [#allocation3], 512, 512, 32
    $region5: #{tpu_custom_call.1} parent=1 // pred_fallthru
      _
    // Predicated region
    $region6: #{tpu_custom_call.1} parent=1 // pred_check
      _
    $region7: #{tpu_custom_call.1} parent=1 // pred_check_branch
      %25 = sbr.rel (0) target = $region9
    $region8: #{tpu_custom_call.1} parent=1 // pred_region
      %s27 = ssub.s32 8192, 8192
      %28 = vsyncadd [#allocation6], %s27
      %s29 = sshll.u32 [#allocation5], 4
      %s30 = int_to_ptr.vmem [resolvable:$true] %s29
      %35 = dma.hbm_to_vmem [thread:$0]  %s1, 8192, %s30, [#allocation6], 128, 128, 8
    $region9: #{tpu_custom_call.1} parent=1 // pred_fallthru
      _
    // Predicated region
    $region10: #{tpu_custom_call.1} parent=1 // pred_check
      _
    $region11: #{tpu_custom_call.1} parent=1 // pred_check_branch
      %37 = sbr.rel (0) target = $region13
    $region12: #{tpu_custom_call.1} parent=1 // pred_region
      _
    $region13: #{tpu_custom_call.1} parent=1 // pred_fallthru
      _
    // Predicated region
    $region14: #{tpu_custom_call.1} parent=1 // pred_check
      _
    $region15: #{tpu_custom_call.1} parent=1 // pred_check_branch
      %39 = sbr.rel (0) target = $region17
    $region16: #{tpu_custom_call.1} parent=1 // pred_region
      %s41 = ssub.s32 2048, 2048
      %42 = vsyncadd [#allocation6], %s41
      %s43 = sshll.u32 [#allocation7], 4
      %s44 = int_to_ptr.vmem [resolvable:$true] %s43
      %49 = dma.hbm_to_vmem [thread:$0]  %s3, 2048, %s44, [#allocation6], 128, 128, 8
    $region17: #{tpu_custom_call.1} parent=1 // pred_fallthru
      _
    // Predicated region
    $region18: #{tpu_custom_call.1} parent=1 // pred_check
      _
    $region19: #{tpu_custom_call.1} parent=1 // pred_check_branch
      %51 = sbr.rel (0) target = $region21
    $region20: #{tpu_custom_call.1} parent=1 // pred_region
      %52 = dma.done [#allocation3], 8192
    $region21: #{tpu_custom_call.1} parent=1 // pred_fallthru
      _
    // Predicated region
    $region22: #{tpu_custom_call.1} parent=1 // pred_check
      _
    $region23: #{tpu_custom_call.1} parent=1 // pred_check_branch
      %54 = sbr.rel (0) target = $region25
    $region24: #{tpu_custom_call.1} parent=1 // pred_region
      %55 = dma.done [#allocation6], 8192
    $region25: #{tpu_custom_call.1} parent=1 // pred_fallthru
      _
    // Predicated region
    $region26: #{tpu_custom_call.1} parent=1 // pred_check
      _
    $region27: #{tpu_custom_call.1} parent=1 // pred_check_branch
      %57 = sbr.rel (0) target = $region29
    $region28: #{tpu_custom_call.1} parent=1 // pred_region
      %58 = dma.done [#allocation6], 2048
    $region29: #{tpu_custom_call.1} parent=1 // pred_fallthru
      _
    %v59 = vld [vmem:[#allocation2] sm:$0xff]
    %v60 = vld [vmem:[#allocation2 + $0x8] sm:$0xff]
    %v61 = vld [vmem:[#allocation2 + $0x10] sm:$0xff]
    %v62 = vld [vmem:[#allocation2 + $0x18] sm:$0xff]
    %v63 = vld [vmem:[#allocation2 + $0x20] sm:$0xff]
    %v64 = vld [vmem:[#allocation2 + $0x28] sm:$0xff]
    %v65 = vld [vmem:[#allocation2 + $0x30] sm:$0xff]
    %v66 = vld [vmem:[#allocation2 + $0x38] sm:$0xff]
    %v67 = vld [vmem:[#allocation2 + $0x40] sm:$0xff]
    %v68 = vld [vmem:[#allocation2 + $0x48] sm:$0xff]
    %v69 = vld [vmem:[#allocation2 + $0x50] sm:$0xff]
    %v70 = vld [vmem:[#allocation2 + $0x58] sm:$0xff]
    %v71 = vld [vmem:[#allocation2 + $0x60] sm:$0xff]
    %v72 = vld [vmem:[#allocation2 + $0x68] sm:$0xff]
    %v73 = vld [vmem:[#allocation2 + $0x70] sm:$0xff]
    %v74 = vld [vmem:[#allocation2 + $0x78] sm:$0xff]
    %v75 = vld [vmem:[#allocation2 + $0x80] sm:$0xff]
    %v76 = vld [vmem:[#allocation2 + $0x88] sm:$0xff]
    %v77 = vld [vmem:[#allocation2 + $0x90] sm:$0xff]
    %v78 = vld [vmem:[#allocation2 + $0x98] sm:$0xff]
    %v79 = vld [vmem:[#allocation2 + $0xa0] sm:$0xff]
    %v80 = vld [vmem:[#allocation2 + $0xa8] sm:$0xff]
    %v81 = vld [vmem:[#allocation2 + $0xb0] sm:$0xff]
    %v82 = vld [vmem:[#allocation2 + $0xb8] sm:$0xff]
    %v83 = vld [vmem:[#allocation2 + $0xc0] sm:$0xff]
    %v84 = vld [vmem:[#allocation2 + $0xc8] sm:$0xff]
    %v85 = vld [vmem:[#allocation2 + $0xd0] sm:$0xff]
    %v86 = vld [vmem:[#allocation2 + $0xd8] sm:$0xff]
    %v87 = vld [vmem:[#allocation2 + $0xe0] sm:$0xff]
    %v88 = vld [vmem:[#allocation2 + $0xe8] sm:$0xff]
    %v89 = vld [vmem:[#allocation2 + $0xf0] sm:$0xff]
    %v90 = vld [vmem:[#allocation2 + $0xf8] sm:$0xff]
    %v91 = vld [vmem:[#allocation2 + $0x100] sm:$0xff]
    %v92 = vld [vmem:[#allocation2 + $0x108] sm:$0xff]
    %v93 = vld [vmem:[#allocation2 + $0x110] sm:$0xff]
    %v94 = vld [vmem:[#allocation2 + $0x118] sm:$0xff]
    %v95 = vld [vmem:[#allocation2 + $0x120] sm:$0xff]
    %v96 = vld [vmem:[#allocation2 + $0x128] sm:$0xff]
    %v97 = vld [vmem:[#allocation2 + $0x130] sm:$0xff]
    %v98 = vld [vmem:[#allocation2 + $0x138] sm:$0xff]
    %v99 = vld [vmem:[#allocation2 + $0x140] sm:$0xff]
    %v100 = vld [vmem:[#allocation2 + $0x148] sm:$0xff]
    %v101 = vld [vmem:[#allocation2 + $0x150] sm:$0xff]
    %v102 = vld [vmem:[#allocation2 + $0x158] sm:$0xff]
    %v103 = vld [vmem:[#allocation2 + $0x160] sm:$0xff]
    %v104 = vld [vmem:[#allocation2 + $0x168] sm:$0xff]
    %v105 = vld [vmem:[#allocation2 + $0x170] sm:$0xff]
    %v106 = vld [vmem:[#allocation2 + $0x178] sm:$0xff]
    %v107 = vld [vmem:[#allocation2 + $0x180] sm:$0xff]
    %v108 = vld [vmem:[#allocation2 + $0x188] sm:$0xff]
    %v109 = vld [vmem:[#allocation2 + $0x190] sm:$0xff]
    %v110 = vld [vmem:[#allocation2 + $0x198] sm:$0xff]
    %v111 = vld [vmem:[#allocation2 + $0x1a0] sm:$0xff]
    %v112 = vld [vmem:[#allocation2 + $0x1a8] sm:$0xff]
    %v113 = vld [vmem:[#allocation2 + $0x1b0] sm:$0xff]
    %v114 = vld [vmem:[#allocation2 + $0x1b8] sm:$0xff]
    %v115 = vld [vmem:[#allocation2 + $0x1c0] sm:$0xff]
    %v116 = vld [vmem:[#allocation2 + $0x1c8] sm:$0xff]
    %v117 = vld [vmem:[#allocation2 + $0x1d0] sm:$0xff]
    %v118 = vld [vmem:[#allocation2 + $0x1d8] sm:$0xff]
    %v119 = vld [vmem:[#allocation2 + $0x1e0] sm:$0xff]
    %v120 = vld [vmem:[#allocation2 + $0x1e8] sm:$0xff]
    %v121 = vld [vmem:[#allocation2 + $0x1f0] sm:$0xff]
    %v122 = vld [vmem:[#allocation2 + $0x1f8] sm:$0xff]
    %v123 = vld [vmem:[#allocation5] sm:$0xff]
    %v124 = vld [vmem:[#allocation5 + $0x8] sm:$0xff]
    %v125 = vld [vmem:[#allocation5 + $0x10] sm:$0xff]
    %v126 = vld [vmem:[#allocation5 + $0x18] sm:$0xff]
    %v127 = vld [vmem:[#allocation5 + $0x20] sm:$0xff]
    %v128 = vld [vmem:[#allocation5 + $0x28] sm:$0xff]
    %v129 = vld [vmem:[#allocation5 + $0x30] sm:$0xff]
    %v130 = vld [vmem:[#allocation5 + $0x38] sm:$0xff]
    %v131 = vld [vmem:[#allocation5 + $0x40] sm:$0xff]
    %v132 = vld [vmem:[#allocation5 + $0x48] sm:$0xff]
    %v133 = vld [vmem:[#allocation5 + $0x50] sm:$0xff]
    %v134 = vld [vmem:[#allocation5 + $0x58] sm:$0xff]
    %v135 = vld [vmem:[#allocation5 + $0x60] sm:$0xff]
    %v136 = vld [vmem:[#allocation5 + $0x68] sm:$0xff]
    %v137 = vld [vmem:[#allocation5 + $0x70] sm:$0xff]
    %v138 = vld [vmem:[#allocation5 + $0x78] sm:$0xff]
    %v139 = vld [vmem:[#allocation5 + $0x80] sm:$0xff]
    %v140 = vld [vmem:[#allocation5 + $0x88] sm:$0xff]
    %v141 = vld [vmem:[#allocation5 + $0x90] sm:$0xff]
    %v142 = vld [vmem:[#allocation5 + $0x98] sm:$0xff]
    %v143 = vld [vmem:[#allocation5 + $0xa0] sm:$0xff]
    %v144 = vld [vmem:[#allocation5 + $0xa8] sm:$0xff]
    %v145 = vld [vmem:[#allocation5 + $0xb0] sm:$0xff]
    %v146 = vld [vmem:[#allocation5 + $0xb8] sm:$0xff]
    %v147 = vld [vmem:[#allocation5 + $0xc0] sm:$0xff]
    %v148 = vld [vmem:[#allocation5 + $0xc8] sm:$0xff]
    %v149 = vld [vmem:[#allocation5 + $0xd0] sm:$0xff]
    %v150 = vld [vmem:[#allocation5 + $0xd8] sm:$0xff]
    %v151 = vld [vmem:[#allocation5 + $0xe0] sm:$0xff]
    %v152 = vld [vmem:[#allocation5 + $0xe8] sm:$0xff]
    %v153 = vld [vmem:[#allocation5 + $0xf0] sm:$0xff]
    %v154 = vld [vmem:[#allocation5 + $0xf8] sm:$0xff]
    %v155 = vld [vmem:[#allocation5 + $0x100] sm:$0xff]
    %v156 = vld [vmem:[#allocation5 + $0x108] sm:$0xff]
    %v157 = vld [vmem:[#allocation5 + $0x110] sm:$0xff]
    %v158 = vld [vmem:[#allocation5 + $0x118] sm:$0xff]
    %v159 = vld [vmem:[#allocation5 + $0x120] sm:$0xff]
    %v160 = vld [vmem:[#allocation5 + $0x128] sm:$0xff]
    %v161 = vld [vmem:[#allocation5 + $0x130] sm:$0xff]
    %v162 = vld [vmem:[#allocation5 + $0x138] sm:$0xff]
    %v163 = vld [vmem:[#allocation5 + $0x140] sm:$0xff]
    %v164 = vld [vmem:[#allocation5 + $0x148] sm:$0xff]
    %v165 = vld [vmem:[#allocation5 + $0x150] sm:$0xff]
    %v166 = vld [vmem:[#allocation5 + $0x158] sm:$0xff]
    %v167 = vld [vmem:[#allocation5 + $0x160] sm:$0xff]
    %v168 = vld [vmem:[#allocation5 + $0x168] sm:$0xff]
    %v169 = vld [vmem:[#allocation5 + $0x170] sm:$0xff]
    %v170 = vld [vmem:[#allocation5 + $0x178] sm:$0xff]
    %v171 = vld [vmem:[#allocation5 + $0x180] sm:$0xff]
    %v172 = vld [vmem:[#allocation5 + $0x188] sm:$0xff]
    %v173 = vld [vmem:[#allocation5 + $0x190] sm:$0xff]
    %v174 = vld [vmem:[#allocation5 + $0x198] sm:$0xff]
    %v175 = vld [vmem:[#allocation5 + $0x1a0] sm:$0xff]
    %v176 = vld [vmem:[#allocation5 + $0x1a8] sm:$0xff]
    %v177 = vld [vmem:[#allocation5 + $0x1b0] sm:$0xff]
    %v178 = vld [vmem:[#allocation5 + $0x1b8] sm:$0xff]
    %v179 = vld [vmem:[#allocation5 + $0x1c0] sm:$0xff]
    %v180 = vld [vmem:[#allocation5 + $0x1c8] sm:$0xff]
    %v181 = vld [vmem:[#allocation5 + $0x1d0] sm:$0xff]
    %v182 = vld [vmem:[#allocation5 + $0x1d8] sm:$0xff]
    %v183 = vld [vmem:[#allocation5 + $0x1e0] sm:$0xff]
    %v184 = vld [vmem:[#allocation5 + $0x1e8] sm:$0xff]
    %v185 = vld [vmem:[#allocation5 + $0x1f0] sm:$0xff]
    %v186 = vld [vmem:[#allocation5 + $0x1f8] sm:$0xff]
    %v187 = vld [vmem:[%s2] sm:$0x1]
    %v189 = vlaneseq
    %v190 = vshrl.u32 %v189, 7
    %v191 = vsub.s32 0, %v190
    %v192 = vrot.slane %v187, %v191
    %194 = vmatprep.subr.mxu0 0.0
    %195 = vmatpush1.msra.mxu0 %v138
    %196 = vmatprep.subr.mxu0 0.0
    %197 = vmatpush1.msra.mxu0 %v137
    %198 = vmatprep.subr.mxu0 0.0
    %199 = vmatpush1.msra.mxu0 %v136
    %200 = vmatprep.subr.mxu0 0.0
    %201 = vmatpush1.msra.mxu0 %v135
    %202 = vmatprep.subr.mxu0 0.0
    %203 = vmatpush1.msra.mxu0 %v134
    %204 = vmatprep.subr.mxu0 0.0
    %205 = vmatpush1.msra.mxu0 %v133
    %206 = vmatprep.subr.mxu0 0.0
    %207 = vmatpush1.msra.mxu0 %v132
    %208 = vmatprep.subr.mxu0 0.0
    %209 = vmatpush1.msra.mxu0 %v131
    %210 = vmatprep.subr.mxu0 0.0
    %211 = vmatpush1.msra.mxu0 %v130
    %212 = vmatprep.subr.mxu0 0.0
    %213 = vmatpush1.msra.mxu0 %v129
    %214 = vmatprep.subr.mxu0 0.0
    %215 = vmatpush1.msra.mxu0 %v128
    %216 = vmatprep.subr.mxu0 0.0
    %217 = vmatpush1.msra.mxu0 %v127
    %218 = vmatprep.subr.mxu0 0.0
    %219 = vmatpush1.msra.mxu0 %v126
    %220 = vmatprep.subr.mxu0 0.0
    %221 = vmatpush1.msra.mxu0 %v125
    %222 = vmatprep.subr.mxu0 0.0
    %223 = vmatpush1.msra.mxu0 %v124
    %224 = vmatprep.subr.mxu0 0.0
    %225 = vmatpush1.msra.mxu0 %v123
    %226 = vmatprep.subr.mxu0 0.0
    %227 = vmatpush2.msra.mxu0 %v154
    %228 = vmatprep.subr.mxu0 0.0
    %229 = vmatpush2.msra.mxu0 %v153
    %230 = vmatprep.subr.mxu0 0.0
    %231 = vmatpush2.msra.mxu0 %v152
    %232 = vmatprep.subr.mxu0 0.0
    %233 = vmatpush2.msra.mxu0 %v151
    %234 = vmatprep.subr.mxu0 0.0
    %235 = vmatpush2.msra.mxu0 %v150
    %236 = vmatprep.subr.mxu0 0.0
    %237 = vmatpush2.msra.mxu0 %v149
    %238 = vmatprep.subr.mxu0 0.0
    %239 = vmatpush2.msra.mxu0 %v148
    %240 = vmatprep.subr.mxu0 0.0
    %241 = vmatpush2.msra.mxu0 %v147
    %242 = vmatprep.subr.mxu0 0.0
    %243 = vmatpush2.msra.mxu0 %v146
    %244 = vmatprep.subr.mxu0 0.0
    %245 = vmatpush2.msra.mxu0 %v145
    %246 = vmatprep.subr.mxu0 0.0
    %247 = vmatpush2.msra.mxu0 %v144
    %248 = vmatprep.subr.mxu0 0.0
    %249 = vmatpush2.msra.mxu0 %v143
    %250 = vmatprep.subr.mxu0 0.0
    %251 = vmatpush2.msra.mxu0 %v142
    %252 = vmatprep.subr.mxu0 0.0
    %253 = vmatpush2.msra.mxu0 %v141
    %254 = vmatprep.subr.mxu0 0.0
    %255 = vmatpush2.msra.mxu0 %v140
    %256 = vmatprep.subr.mxu0 0.0
    %257 = vmatpush2.msra.mxu0 %v139
    %258 = vmatprep.mubr.f32.mxu0 %v60
    %259 = vmatmul.mubr.f32.gmra.mxu0 %v59
    %v260 = vpop.f32.mrf.mxu0
    %v261 = vadd.f32 %v192, %v260
    %v262 = vpop.f32.mrf.mxu0
    %263 = vmatprep.mubr.f32.mxu0 %v64
    %264 = vmatmul.mubr.f32.gmra.mxu0 %v63
    %v265 = vpop.f32.mrf.mxu0
    %v266 = vadd.f32 %v192, %v265
    %v267 = vpop.f32.mrf.mxu0
    %268 = vmatprep.mubr.f32.mxu0 %v68
    %269 = vmatmul.mubr.f32.gmra.mxu0 %v67
    %v270 = vpop.f32.mrf.mxu0
    %v271 = vadd.f32 %v192, %v270
    %v272 = vpop.f32.mrf.mxu0
    %273 = vmatprep.mubr.f32.mxu0 %v72
    %274 = vmatmul.mubr.f32.gmra.mxu0 %v71
    %v275 = vpop.f32.mrf.mxu0
    %v276 = vadd.f32 %v192, %v275
    %v277 = vpop.f32.mrf.mxu0
    %278 = vmatprep.mubr.f32.mxu0 %v76
    %279 = vmatmul.mubr.f32.gmra.mxu0 %v75
    %v280 = vpop.f32.mrf.mxu0
    %v281 = vadd.f32 %v192, %v280
    %v282 = vpop.f32.mrf.mxu0
    %283 = vmatprep.mubr.f32.mxu0 %v80
    %284 = vmatmul.mubr.f32.gmra.mxu0 %v79
    %v285 = vpop.f32.mrf.mxu0
    %v286 = vadd.f32 %v192, %v285
    %v287 = vpop.f32.mrf.mxu0
    %288 = vmatprep.mubr.f32.mxu0 %v84
    %289 = vmatmul.mubr.f32.gmra.mxu0 %v83
    %v290 = vpop.f32.mrf.mxu0
    %v291 = vadd.f32 %v192, %v290
    %v292 = vpop.f32.mrf.mxu0
    %293 = vmatprep.mubr.f32.mxu0 %v88
    %294 = vmatmul.mubr.f32.gmra.mxu0 %v87
    %v295 = vpop.f32.mrf.mxu0
    %v296 = vadd.f32 %v192, %v295
    %v297 = vpop.f32.mrf.mxu0
    %298 = vmatprep.mubr.f32.mxu0 %v92
    %299 = vmatmul.mubr.f32.gmra.mxu0 %v91
    %v300 = vpop.f32.mrf.mxu0
    %v301 = vadd.f32 %v192, %v300
    %v302 = vpop.f32.mrf.mxu0
    %303 = vmatprep.mubr.f32.mxu0 %v96
    %304 = vmatmul.mubr.f32.gmra.mxu0 %v95
    %v305 = vpop.f32.mrf.mxu0
    %v306 = vadd.f32 %v192, %v305
    %v307 = vpop.f32.mrf.mxu0
    %308 = vmatprep.mubr.f32.mxu0 %v100
    %309 = vmatmul.mubr.f32.gmra.mxu0 %v99
    %v310 = vpop.f32.mrf.mxu0
    %v311 = vadd.f32 %v192, %v310
    %v312 = vpop.f32.mrf.mxu0
    %313 = vmatprep.mubr.f32.mxu0 %v104
    %314 = vmatmul.mubr.f32.gmra.mxu0 %v103
    %v315 = vpop.f32.mrf.mxu0
    %v316 = vadd.f32 %v192, %v315
    %v317 = vpop.f32.mrf.mxu0
    %318 = vmatprep.mubr.f32.mxu0 %v108
    %319 = vmatmul.mubr.f32.gmra.mxu0 %v107
    %v320 = vpop.f32.mrf.mxu0
    %v321 = vadd.f32 %v192, %v320
    %v322 = vpop.f32.mrf.mxu0
    %323 = vmatprep.mubr.f32.mxu0 %v112
    %324 = vmatmul.mubr.f32.gmra.mxu0 %v111
    %v325 = vpop.f32.mrf.mxu0
    %v326 = vadd.f32 %v192, %v325
    %v327 = vpop.f32.mrf.mxu0
    %328 = vmatprep.mubr.f32.mxu0 %v116
    %329 = vmatmul.mubr.f32.gmra.mxu0 %v115
    %v330 = vpop.f32.mrf.mxu0
    %v331 = vadd.f32 %v192, %v330
    %v332 = vpop.f32.mrf.mxu0
    %333 = vmatprep.mubr.f32.mxu0 %v120
    %334 = vmatmul.mubr.f32.gmra.mxu0 %v119
    %v335 = vpop.f32.mrf.mxu0
    %v336 = vadd.f32 %v192, %v335
    %v337 = vpop.f32.mrf.mxu0
    %338 = vdwg.mxu0
    %339 = vmatprep.subr.mxu0 0.0
    %340 = vmatpush1.msra.mxu0 %v170
    %341 = vmatprep.subr.mxu0 0.0
    %342 = vmatpush1.msra.mxu0 %v169
    %343 = vmatprep.subr.mxu0 0.0
    %344 = vmatpush1.msra.mxu0 %v168
    %345 = vmatprep.subr.mxu0 0.0
    %346 = vmatpush1.msra.mxu0 %v167
    %347 = vmatprep.subr.mxu0 0.0
    %348 = vmatpush1.msra.mxu0 %v166
    %349 = vmatprep.subr.mxu0 0.0
    %350 = vmatpush1.msra.mxu0 %v165
    %351 = vmatprep.subr.mxu0 0.0
    %352 = vmatpush1.msra.mxu0 %v164
    %353 = vmatprep.subr.mxu0 0.0
    %354 = vmatpush1.msra.mxu0 %v163
    %355 = vmatprep.subr.mxu0 0.0
    %356 = vmatpush1.msra.mxu0 %v162
    %357 = vmatprep.subr.mxu0 0.0
    %358 = vmatpush1.msra.mxu0 %v161
    %359 = vmatprep.subr.mxu0 0.0
    %360 = vmatpush1.msra.mxu0 %v160
    %361 = vmatprep.subr.mxu0 0.0
    %362 = vmatpush1.msra.mxu0 %v159
    %363 = vmatprep.subr.mxu0 0.0
    %364 = vmatpush1.msra.mxu0 %v158
    %365 = vmatprep.subr.mxu0 0.0
    %366 = vmatpush1.msra.mxu0 %v157
    %367 = vmatprep.subr.mxu0 0.0
    %368 = vmatpush1.msra.mxu0 %v156
    %369 = vmatprep.subr.mxu0 0.0
    %370 = vmatpush1.msra.mxu0 %v155
    %371 = vmatprep.subr.mxu0 0.0
    %372 = vmatpush2.msra.mxu0 %v186
    %373 = vmatprep.subr.mxu0 0.0
    %374 = vmatpush2.msra.mxu0 %v185
    %375 = vmatprep.subr.mxu0 0.0
    %376 = vmatpush2.msra.mxu0 %v184
    %377 = vmatprep.subr.mxu0 0.0
    %378 = vmatpush2.msra.mxu0 %v183
    %379 = vmatprep.subr.mxu0 0.0
    %380 = vmatpush2.msra.mxu0 %v182
    %381 = vmatprep.subr.mxu0 0.0
    %382 = vmatpush2.msra.mxu0 %v181
    %383 = vmatprep.subr.mxu0 0.0
    %384 = vmatpush2.msra.mxu0 %v180
    %385 = vmatprep.subr.mxu0 0.0
    %386 = vmatpush2.msra.mxu0 %v179
    %387 = vmatprep.subr.mxu0 0.0
    %388 = vmatpush2.msra.mxu0 %v178
    %389 = vmatprep.subr.mxu0 0.0
    %390 = vmatpush2.msra.mxu0 %v177
    %391 = vmatprep.subr.mxu0 0.0
    %392 = vmatpush2.msra.mxu0 %v176
    %393 = vmatprep.subr.mxu0 0.0
    %394 = vmatpush2.msra.mxu0 %v175
    %395 = vmatprep.subr.mxu0 0.0
    %396 = vmatpush2.msra.mxu0 %v174
    %397 = vmatprep.subr.mxu0 0.0
    %398 = vmatpush2.msra.mxu0 %v173
    %399 = vmatprep.subr.mxu0 0.0
    %400 = vmatpush2.msra.mxu0 %v172
    %401 = vmatprep.subr.mxu0 0.0
    %402 = vmatpush2.msra.mxu0 %v171
    %403 = vmatprep.mubr.f32.mxu0 %v62
    %404 = vmatmul.mubr.f32.gmra.mxu0 %v61
    %v405 = vpop.f32.mrf.mxu0
    %v406 = vadd.f32 %v261, %v405
    %v407 = vpop.f32.mrf.mxu0
    %408 = vmatprep.mubr.f32.mxu0 %v66
    %409 = vmatmul.mubr.f32.gmra.mxu0 %v65
    %v410 = vpop.f32.mrf.mxu0
    %v411 = vadd.f32 %v266, %v410
    %v412 = vpop.f32.mrf.mxu0
    %413 = vmatprep.mubr.f32.mxu0 %v70
    %414 = vmatmul.mubr.f32.gmra.mxu0 %v69
    %v415 = vpop.f32.mrf.mxu0
    %v416 = vadd.f32 %v271, %v415
    %v417 = vpop.f32.mrf.mxu0
    %418 = vmatprep.mubr.f32.mxu0 %v74
    %419 = vmatmul.mubr.f32.gmra.mxu0 %v73
    %v420 = vpop.f32.mrf.mxu0
    %v421 = vadd.f32 %v276, %v420
    %v422 = vpop.f32.mrf.mxu0
    %423 = vmatprep.mubr.f32.mxu0 %v78
    %424 = vmatmul.mubr.f32.gmra.mxu0 %v77
    %v425 = vpop.f32.mrf.mxu0
    %v426 = vadd.f32 %v281, %v425
    %v427 = vpop.f32.mrf.mxu0
    %428 = vmatprep.mubr.f32.mxu0 %v82
    %429 = vmatmul.mubr.f32.gmra.mxu0 %v81
    %v430 = vpop.f32.mrf.mxu0
    %v431 = vadd.f32 %v286, %v430
    %v432 = vpop.f32.mrf.mxu0
    %433 = vmatprep.mubr.f32.mxu0 %v86
    %434 = vmatmul.mubr.f32.gmra.mxu0 %v85
    %v435 = vpop.f32.mrf.mxu0
    %v436 = vadd.f32 %v291, %v435
    %v437 = vpop.f32.mrf.mxu0
    %438 = vmatprep.mubr.f32.mxu0 %v90
    %439 = vmatmul.mubr.f32.gmra.mxu0 %v89
    %v440 = vpop.f32.mrf.mxu0
    %v441 = vadd.f32 %v296, %v440
    %v442 = vpop.f32.mrf.mxu0
    %443 = vmatprep.mubr.f32.mxu0 %v94
    %444 = vmatmul.mubr.f32.gmra.mxu0 %v93
    %v445 = vpop.f32.mrf.mxu0
    %v446 = vadd.f32 %v301, %v445
    %v447 = vpop.f32.mrf.mxu0
    %448 = vmatprep.mubr.f32.mxu0 %v98
    %449 = vmatmul.mubr.f32.gmra.mxu0 %v97
    %v450 = vpop.f32.mrf.mxu0
    %v451 = vadd.f32 %v306, %v450
    %v452 = vpop.f32.mrf.mxu0
    %453 = vmatprep.mubr.f32.mxu0 %v102
    %454 = vmatmul.mubr.f32.gmra.mxu0 %v101
    %v455 = vpop.f32.mrf.mxu0
    %v456 = vadd.f32 %v311, %v455
    %v457 = vpop.f32.mrf.mxu0
    %458 = vmatprep.mubr.f32.mxu0 %v106
    %459 = vmatmul.mubr.f32.gmra.mxu0 %v105
    %v460 = vpop.f32.mrf.mxu0
    %v461 = vadd.f32 %v316, %v460
    %v462 = vpop.f32.mrf.mxu0
    %463 = vmatprep.mubr.f32.mxu0 %v110
    %464 = vmatmul.mubr.f32.gmra.mxu0 %v109
    %v465 = vpop.f32.mrf.mxu0
    %v466 = vadd.f32 %v321, %v465
    %v467 = vpop.f32.mrf.mxu0
    %468 = vmatprep.mubr.f32.mxu0 %v114
    %469 = vmatmul.mubr.f32.gmra.mxu0 %v113
    %v470 = vpop.f32.mrf.mxu0
    %v471 = vadd.f32 %v326, %v470
    %v472 = vpop.f32.mrf.mxu0
    %473 = vmatprep.mubr.f32.mxu0 %v118
    %474 = vmatmul.mubr.f32.gmra.mxu0 %v117
    %v475 = vpop.f32.mrf.mxu0
    %v476 = vadd.f32 %v331, %v475
    %v477 = vpop.f32.mrf.mxu0
    %478 = vmatprep.mubr.f32.mxu0 %v122
    %479 = vmatmul.mubr.f32.gmra.mxu0 %v121
    %v480 = vpop.f32.mrf.mxu0
    %v481 = vadd.f32 %v336, %v480
    %v482 = vpop.f32.mrf.mxu0
    %483 = vdwg.mxu0
    %v484 = vld [vmem:[#allocation7] sm:$0xff]
    %v485 = vld [vmem:[#allocation7 + $0x8] sm:$0xff]
    %v486 = vld [vmem:[#allocation7 + $0x10] sm:$0xff]
    %v487 = vld [vmem:[#allocation7 + $0x18] sm:$0xff]
    %v488 = vld [vmem:[#allocation7 + $0x20] sm:$0xff]
    %v489 = vld [vmem:[#allocation7 + $0x28] sm:$0xff]
    %v490 = vld [vmem:[#allocation7 + $0x30] sm:$0xff]
    %v491 = vld [vmem:[#allocation7 + $0x38] sm:$0xff]
    %v492 = vld [vmem:[#allocation7 + $0x40] sm:$0xff]
    %v493 = vld [vmem:[#allocation7 + $0x48] sm:$0xff]
    %v494 = vld [vmem:[#allocation7 + $0x50] sm:$0xff]
    %v495 = vld [vmem:[#allocation7 + $0x58] sm:$0xff]
    %v496 = vld [vmem:[#allocation7 + $0x60] sm:$0xff]
    %v497 = vld [vmem:[#allocation7 + $0x68] sm:$0xff]
    %v498 = vld [vmem:[#allocation7 + $0x70] sm:$0xff]
    %v499 = vld [vmem:[#allocation7 + $0x78] sm:$0xff]
    %v500 = vadd.f32 %v406, %v484
    %v501 = vadd.f32 %v411, %v485
    %v502 = vadd.f32 %v416, %v486
    %v503 = vadd.f32 %v421, %v487
    %v504 = vadd.f32 %v426, %v488
    %v505 = vadd.f32 %v431, %v489
    %v506 = vadd.f32 %v436, %v490
    %v507 = vadd.f32 %v441, %v491
    %v508 = vadd.f32 %v446, %v492
    %v509 = vadd.f32 %v451, %v493
    %v510 = vadd.f32 %v456, %v494
    %v511 = vadd.f32 %v461, %v495
    %v512 = vadd.f32 %v466, %v496
    %v513 = vadd.f32 %v471, %v497
    %v514 = vadd.f32 %v476, %v498
    %v515 = vadd.f32 %v481, %v499
    %516 = vst [vmem:[#allocation8] sm:$0xff] %v500
    %517 = vst [vmem:[#allocation8 + $0x8] sm:$0xff] %v501
    %518 = vst [vmem:[#allocation8 + $0x10] sm:$0xff] %v502
    %519 = vst [vmem:[#allocation8 + $0x18] sm:$0xff] %v503
    %520 = vst [vmem:[#allocation8 + $0x20] sm:$0xff] %v504
    %521 = vst [vmem:[#allocation8 + $0x28] sm:$0xff] %v505
    %522 = vst [vmem:[#allocation8 + $0x30] sm:$0xff] %v506
    %523 = vst [vmem:[#allocation8 + $0x38] sm:$0xff] %v507
    %524 = vst [vmem:[#allocation8 + $0x40] sm:$0xff] %v508
    %525 = vst [vmem:[#allocation8 + $0x48] sm:$0xff] %v509
    %526 = vst [vmem:[#allocation8 + $0x50] sm:$0xff] %v510
    %527 = vst [vmem:[#allocation8 + $0x58] sm:$0xff] %v511
    %528 = vst [vmem:[#allocation8 + $0x60] sm:$0xff] %v512
    %529 = vst [vmem:[#allocation8 + $0x68] sm:$0xff] %v513
    %530 = vst [vmem:[#allocation8 + $0x70] sm:$0xff] %v514
    %531 = vst [vmem:[#allocation8 + $0x78] sm:$0xff] %v515
    // Predicated region
    $region30: #{tpu_custom_call.1} parent=1 // pred_check
      _
    $region31: #{tpu_custom_call.1} parent=1 // pred_check_branch
      %533 = sbr.rel (0) target = $region33
    $region32: #{tpu_custom_call.1} parent=1 // pred_region
      %s535 = ssub.s32 2048, 2048
      %536 = vsyncadd [#allocation4], %s535
      %s537 = sshll.u32 [#allocation8], 4
      %s538 = int_to_ptr.vmem [resolvable:$true] %s537
      %543 = dma.vmem_to_hbm [thread:$0]  %s538, 2048, %s4, [#allocation4], 128, 128, 8
    $region33: #{tpu_custom_call.1} parent=1 // pred_fallthru
      _
    // Predicated region
    $region34: #{tpu_custom_call.1} parent=1 // pred_check
      _
    $region35: #{tpu_custom_call.1} parent=1 // pred_check_branch
      %545 = sbr.rel (0) target = $region37
    $region36: #{tpu_custom_call.1} parent=1 // pred_region
      %546 = dma.done [#allocation4], 2048
    $region37: #{tpu_custom_call.1} parent=1 // pred_fallthru
      _
    %547 = vsyncpa [#allocation3], 1
    %548 = vsyncpa [#allocation6], 1
    %549 = vsyncpa [#allocation4], 1

</llo_original>
